<compile_context>
chip_gen: v6e
topology: v6e:2x2x1
jax: 0.10.0
libtpu: 0.0.40
codegen_flags: <defaults>
</compile_context>

<pallas_src>
import math

import jax
import jax.numpy as jnp
from jax import lax
from jax.experimental import pallas as pl
from jax.experimental.pallas import tpu as pltpu

VMEM_LIMIT_BYTES = 32 * 1024 * 1024


# ----------------------------------------------------------------------------
# Generic tiled linear kernel: (TM, K) @ (K, N) + bias, f32 accumulation.
# ----------------------------------------------------------------------------
def linear_kernel(x_ref, w_ref, b_ref, o_ref):
    acc = jnp.dot(x_ref[...], w_ref[...], preferred_element_type=jnp.float32)
    o_ref[...] = (acc + b_ref[...]).astype(o_ref.dtype)


def linear(x, w, b, out_dtype, row_tile=256):
    M, K = x.shape
    N = w.shape[1]
    tm = M if M <= row_tile else row_tile
    assert M % tm == 0, "row count must divide the row tile (pad wrapper-side)"
    return pl.pallas_call(
        linear_kernel,
        out_shape=jax.ShapeDtypeStruct((M, N), out_dtype),
        grid_spec=pltpu.PrefetchScalarGridSpec(
            num_scalar_prefetch=0,
            grid=(M // tm,),
            in_specs=[
                pl.BlockSpec((tm, K), lambda i: (i, 0)),   # pipelined row tiles
                pl.BlockSpec((K, N), lambda i: (0, 0)),    # resident weights
                pl.BlockSpec((1, N), lambda i: (0, 0)),    # resident bias
            ],
            out_specs=pl.BlockSpec((tm, N), lambda i: (i, 0)),
        ),
        compiler_params=pltpu.CompilerParams(
            dimension_semantics=("parallel",),
            vmem_limit_bytes=VMEM_LIMIT_BYTES),
    )(x, w, b)


# ----------------------------------------------------------------------------
# Flash attention kernel: grid = (batch*heads, q_tiles, kv_tiles).
# Online softmax; m/l/acc live in VMEM scratch across the kv axis.
# ----------------------------------------------------------------------------
def flash_attn_kernel(q_ref, k_ref, v_ref, o_ref, m_sc, l_sc, acc_sc):
    ki = pl.program_id(2)

    @pl.when(ki == 0)
    def _():
        m_sc[...] = jnp.full(m_sc.shape, -jnp.inf, dtype=jnp.float32)
        l_sc[...] = jnp.zeros(l_sc.shape, dtype=jnp.float32)
        acc_sc[...] = jnp.zeros(acc_sc.shape, dtype=jnp.float32)

    q = q_ref[0]                       # (TQ, hd) bf16, scale folded into Wq
    k = k_ref[0]                       # (TK, hd) bf16
    # s = q @ k^T without materializing the transpose.
    s = lax.dot_general(q, k, (((1,), (1,)), ((), ())),
                        preferred_element_type=jnp.float32)   # (TQ, TK) f32

    m_prev = m_sc[...]
    m_new = jnp.maximum(m_prev, jnp.max(s, axis=-1, keepdims=True))
    alpha = jnp.exp(m_prev - m_new)
    p = jnp.exp(s - m_new)
    l_sc[...] = alpha * l_sc[...] + jnp.sum(p, axis=-1, keepdims=True)
    acc_sc[...] = alpha * acc_sc[...] + jnp.dot(
        p.astype(v_ref.dtype), v_ref[0], preferred_element_type=jnp.float32)
    m_sc[...] = m_new

    @pl.when(ki == pl.num_programs(2) - 1)
    def _():
        # Exact divide at finalize (per review: avoid approx-reciprocal error /
        # NaN-on-empty-row hazards); cost is negligible once per q-tile.
        o_ref[0] = (acc_sc[...] / l_sc[...]).astype(o_ref.dtype)


def flash_attention(q, k, v, q_tile=256, kv_tile=256):
    BH, S, hd = q.shape
    tq = S if S <= q_tile else q_tile
    tk = S if S <= kv_tile else kv_tile
    assert S % tq == 0 and S % tk == 0
    grid = (BH, S // tq, S // tk)
    return pl.pallas_call(
        flash_attn_kernel,
        out_shape=jax.ShapeDtypeStruct((BH, S, hd), q.dtype),
        grid_spec=pltpu.PrefetchScalarGridSpec(
            num_scalar_prefetch=0,
            grid=grid,
            in_specs=[
                pl.BlockSpec((1, tq, hd), lambda b, qi, ki: (b, qi, 0)),
                pl.BlockSpec((1, tk, hd), lambda b, qi, ki: (b, ki, 0)),
                pl.BlockSpec((1, tk, hd), lambda b, qi, ki: (b, ki, 0)),
            ],
            out_specs=pl.BlockSpec((1, tq, hd), lambda b, qi, ki: (b, qi, 0)),
            scratch_shapes=[
                pltpu.VMEM((tq, 1), jnp.float32),    # running max m
                pltpu.VMEM((tq, 1), jnp.float32),    # running denom l
                pltpu.VMEM((tq, hd), jnp.float32),   # running numerator acc
            ],
        ),
        compiler_params=pltpu.CompilerParams(
            dimension_semantics=("parallel", "parallel", "arbitrary"),
            vmem_limit_bytes=VMEM_LIMIT_BYTES),
    )(q, k, v)


# ----------------------------------------------------------------------------
# Full forward pass
# ----------------------------------------------------------------------------
def multihead_attention_pallas(x, params, num_heads):
    w_fused, b_fused, w_o_t, b_o = params
    B, S, Din = x.shape
    E = w_o_t.shape[1]
    H = num_heads
    hd = E // H
    BS = B * S

    x2 = x.reshape(BS, Din).astype(jnp.bfloat16)

    # 1) fused QKV projection (scale already folded into the Q columns/bias).
    qkv = linear(x2, w_fused, b_fused, jnp.bfloat16)              # (BS, 3E) bf16

    # Layout plumbing: split q/k/v, move heads to the leading (batch) axis.
    def split_heads(a):
        return a.reshape(B, S, H, hd).transpose(0, 2, 1, 3).reshape(B * H, S, hd)

    q = split_heads(qkv[:, :E])
    k = split_heads(qkv[:, E:2 * E])
    v = split_heads(qkv[:, 2 * E:])

    # 2) flash attention over (batch*head, q_tile, kv_tile).
    vals = flash_attention(q, k, v)                               # (B*H, S, hd)
    vals = vals.reshape(B, H, S, hd).transpose(0, 2, 1, 3).reshape(BS, E)

    # 3) output projection.
    out = linear(vals, w_o_t, b_o, jnp.float32)                   # (BS, E) f32
    return out.reshape(B, S, E)


# ----------------------------------------------------------------------------
# Parameter prep from PyTorch layout:
#   qkv_proj.weight (3E, Din): output feature f -> head f//(3*hd), within-head
#   ordering [q | k | v].  o_proj.weight (E, E).
# Produces: fused (Din, 3E) weight with columns [Q(all heads) | K | V]
# (head-major, hd-minor), Q scaled by 1/sqrt(hd); Wo^T; f32 biases.
# ----------------------------------------------------------------------------
def prepare_params(w_qkv, b_qkv, w_o, b_o, num_heads):
    E = w_o.shape[0]
    Din = w_qkv.shape[1]
    H = num_heads
    hd = E // H
    scale = 1.0 / math.sqrt(hd)

    w3 = w_qkv.reshape(H, 3, hd, Din)               # (H, [q|k|v], hd, Din)
    wq = w3[:, 0].reshape(E, Din).T * scale         # (Din, E), col = h*hd + d
    wk = w3[:, 1].reshape(E, Din).T
    wv = w3[:, 2].reshape(E, Din).T
    w_fused = jnp.concatenate([wq, wk, wv], axis=1).astype(jnp.bfloat16)

    b3 = b_qkv.reshape(H, 3, hd)
    b_fused = jnp.concatenate([(b3[:, 0] * scale).reshape(E),
                               b3[:, 1].reshape(E),
                               b3[:, 2].reshape(E)]).reshape(1, 3 * E)
    b_fused = b_fused.astype(jnp.float32)

    w_o_t = w_o.T.astype(jnp.bfloat16)              # (E, E)
    b_o2 = b_o.reshape(1, E).astype(jnp.float32)
    return (w_fused, b_fused, w_o_t, b_o2)


# ----------------------------------------------------------------------------
# Pure-JAX f32 reference mirroring the PyTorch module math.
# ----------------------------------------------------------------------------
def mha_ref(x, w_qkv, b_qkv, w_o, b_o, num_heads):
    B, S, Din = x.shape
    E = w_o.shape[0]
    hd = E // num_heads
    qkv = x @ w_qkv.T + b_qkv                                  # (B, S, 3E)
    qkv = qkv.reshape(B, S, num_heads, 3 * hd).transpose(0, 2, 1, 3)
    q, k, v = jnp.split(qkv, 3, axis=-1)
    logits = jnp.einsum('bhqd,bhkd->bhqk', q, k) / math.sqrt(hd)
    attn = jax.nn.softmax(logits, axis=-1)
    vals = jnp.einsum('bhqk,bhkd->bhqd', attn, v)
    vals = vals.transpose(0, 2, 1, 3).reshape(B, S, E)
    return vals @ w_o.T + b_o


def xavier_uniform(key, shape):
    fan_out, fan_in = shape
    bound = math.sqrt(6.0 / (fan_in + fan_out))
    return jax.random.uniform(key, shape, jnp.float32, -bound, bound)


if __name__ == "__main__":
    B, S = 2, 8
    input_dim = 32
    embed_dim = 32
    num_heads = 4

    key = jax.random.PRNGKey(0)
    kx, k1, k2 = jax.random.split(key, 3)
    x = jax.random.normal(kx, (B, S, input_dim), jnp.float32)

    # PyTorch-layout parameters (xavier weights, zero biases, as in the module).
    w_qkv = xavier_uniform(k1, (3 * embed_dim, input_dim))
    b_qkv = jnp.zeros((3 * embed_dim,), jnp.float32)
    w_o = xavier_uniform(k2, (embed_dim, embed_dim))
    b_o = jnp.zeros((embed_dim,), jnp.float32)

    params = prepare_params(w_qkv, b_qkv, w_o, b_o, num_heads)

    out = multihead_attention_pallas(x, params, num_heads)
    out = jax.block_until_ready(out)

    ref = mha_ref(x, w_qkv, b_qkv, w_o, b_o, num_heads)
    assert out.shape == (B, S, embed_dim)
    # bf16 MXU operands (per perf review) vs an exact-f32 reference => looser
    # tolerance; softmax/accumulation are f32 and the divide is exact.
    assert jnp.allclose(out, ref, atol=5e-2, rtol=5e-2), "mismatch vs JAX reference"

    print("KERNEL_OK")
</pallas_src>

<mosaic_0001>
module attributes {stable_mosaic.version = 11 : i64} {
  func.func @linear_kernel(%arg0: i32, %arg1: memref<16x32xbf16, #tpu.memory_space<vmem>>, %arg2: memref<32x96xbf16, #tpu.memory_space<vmem>>, %arg3: memref<1x96xf32, #tpu.memory_space<vmem>>, %arg4: memref<16x96xbf16, #tpu.memory_space<vmem>>) attributes {dimension_semantics = [#tpu.dimension_semantics<parallel>], iteration_bounds = array<i64: 1>, scalar_prefetch = 0 : i64, scratch_operands = 0 : i64, tpu.core_type = #tpu.core_type<tc>, window_params = [{transform_indices = @transform_0, window_bounds = array<i64: 16, 32>}, {pipeline_mode = #tpu.pipeline_mode<synchronous>, transform_indices = @transform_1, window_bounds = array<i64: 32, 96>}, {pipeline_mode = #tpu.pipeline_mode<synchronous>, transform_indices = @transform_2, window_bounds = array<i64: 1, 96>}, {transform_indices = @transform_3, window_bounds = array<i64: 16, 96>}]} {
    %c0 = arith.constant 0 : index
    %c0_0 = arith.constant 0 : index
    %0 = vector.load %arg1[%c0, %c0_0] : memref<16x32xbf16, #tpu.memory_space<vmem>>, vector<16x32xbf16>
    %c0_1 = arith.constant 0 : index
    %c0_2 = arith.constant 0 : index
    %1 = vector.load %arg2[%c0_1, %c0_2] : memref<32x96xbf16, #tpu.memory_space<vmem>>, vector<32x96xbf16>
    %cst = arith.constant dense<0.000000e+00> : vector<16x96xf32>
    %2 = tpu.matmul %0, %1, %cst {dimension_numbers = #tpu.dot_dimension_numbers<[1], [0], [0], [1], [0, 0, 1, 1], [], []>} : vector<16x32xbf16>, vector<32x96xbf16>, vector<16x96xf32> -> vector<16x96xf32>
    %c0_3 = arith.constant 0 : index
    %c0_4 = arith.constant 0 : index
    %3 = vector.load %arg3[%c0_3, %c0_4] : memref<1x96xf32, #tpu.memory_space<vmem>>, vector<1x96xf32>
    %4 = vector.broadcast %3 : vector<1x96xf32> to vector<16x96xf32>
    %5 = arith.addf %2, %4 : vector<16x96xf32>
    %6 = arith.truncf %5 : vector<16x96xf32> to vector<16x96xbf16>
    %c0_5 = arith.constant 0 : index
    %c0_6 = arith.constant 0 : index
    %7 = vector.load %arg4[%c0_5, %c0_6] : memref<16x96xbf16, #tpu.memory_space<vmem>>, vector<16x96xbf16>
    tpu.vector_store %arg4[%c0_5, %c0_6], %6 {strides = array<i32>} : memref<16x96xbf16, #tpu.memory_space<vmem>>, vector<16x96xbf16>,
    return
  }
  func.func @transform_0(%arg0: i32) -> (i32, i32) {
    %c0_i32 = arith.constant 0 : i32
    %c0_i32_0 = arith.constant 0 : i32
    return %arg0, %c0_i32 : i32, i32
  }
  func.func @transform_1(%arg0: i32) -> (i32, i32) {
    %c0_i32 = arith.constant 0 : i32
    %c0_i32_0 = arith.constant 0 : i32
    %c0_i32_1 = arith.constant 0 : i32
    return %c0_i32, %c0_i32_0 : i32, i32
  }
  func.func @transform_2(%arg0: i32) -> (i32, i32) {
    %c0_i32 = arith.constant 0 : i32
    %c0_i32_0 = arith.constant 0 : i32
    %c0_i32_1 = arith.constant 0 : i32
    return %c0_i32, %c0_i32_0 : i32, i32
  }
  func.func @transform_3(%arg0: i32) -> (i32, i32) {
    %c0_i32 = arith.constant 0 : i32
    %c0_i32_0 = arith.constant 0 : i32
    return %arg0, %c0_i32 : i32, i32
  }
}

</mosaic_0001>

<llo_original>
// kernel: tpu_custom_call.1
$region0: #{tpu_custom_call.1}
  #allocation0 [shape = 'u32[]', space=smem, size = 0x4, offset = 0x4, fixed_abs, tag = 'smem constant byte address 0x4 - core index']
  #allocation1 [shape = 'u32[144,128]{1,0:T(1,128)}', space=vmem, size = 0x12000, scoped, tag = 'internal scratch']
  %s0 = inlined_call_operand.hbm [shape: bf16[16,32], index: 0, kind: input, shape index: {}]
  %s1 = inlined_call_operand.hbm [shape: bf16[32,96], index: 1, kind: input, shape index: {}]
  %s2 = inlined_call_operand.vmem [shape: f32[1,96], index: 2, kind: input, shape index: {}]
  %s3 = inlined_call_operand.hbm [shape: bf16[16,96], index: 3, kind: output, shape index: {}]
  %s4 = sld [smem:[#allocation0]]
  $region30: #{tpu_custom_call.1} parent=0
    _
  %s6 = ssub.s32 1, %s4
  %s7 = scalar_select 0, %s6, %s4
  $region1: #{tpu_custom_call.1} parent=0
    #allocation2 [shape = 'u8[4096]{0}', space=vmem, size = 0x1000, scoped, tag = 'input window, operand 0, single buffered']
    #allocation3 [shape = 's32[1]{0}', space=sflag, size = 0x4, scoped, tag = 'scoped memory for tpu_custom_call.1']
    #allocation4 [shape = 's32[1]{0}', space=sflag, size = 0x4, scoped, tag = 'scoped memory for tpu_custom_call.1']
    #allocation5 [shape = 'u8[8192]{0}', space=vmem, size = 0x2000, scoped, tag = 'input window, operand 1, single buffered']
    #allocation6 [shape = 's32[1]{0}', space=sflag, size = 0x4, scoped, tag = 'scoped memory for tpu_custom_call.1']
    #allocation7 [shape = 'u8[4096]{0}', space=vmem, size = 0x1000, scoped, tag = 'output window, operand 0, single buffered']
    %8 = vsyncpa [#allocation3], 0
    %9 = vsyncpa [#allocation6], 0
    %10 = vsyncpa [#allocation4], 0
    // Predicated region
    $region2: #{tpu_custom_call.1} parent=1 // pred_check
      _
    $region3: #{tpu_custom_call.1} parent=1 // pred_check_branch
      %12 = sbr.rel (0) target = $region5
    $region4: #{tpu_custom_call.1} parent=1 // pred_region
      %s14 = ssub.s32 128, 128
      %15 = vsyncadd [#allocation3], %s14
      %s16 = sshll.u32 [#allocation2], 4
      %s17 = int_to_ptr.vmem [resolvable:$true] %s16
      %22 = dma.hbm_to_vmem [thread:$0]  %s0, 128, %s17, [#allocation3], 64, 64, 4
    $region5: #{tpu_custom_call.1} parent=1 // pred_fallthru
      _
    // Predicated region
    $region6: #{tpu_custom_call.1} parent=1 // pred_check
      _
    $region7: #{tpu_custom_call.1} parent=1 // pred_check_branch
      %24 = sbr.rel (0) target = $region9
    $region8: #{tpu_custom_call.1} parent=1 // pred_region
      %s26 = ssub.s32 256, 256
      %27 = vsyncadd [#allocation6], %s26
      %s28 = sshll.u32 [#allocation5], 4
      %s29 = int_to_ptr.vmem [resolvable:$true] %s28
      %34 = dma.hbm_to_vmem [thread:$0]  %s1, 256, %s29, [#allocation6], 64, 64, 4
    $region9: #{tpu_custom_call.1} parent=1 // pred_fallthru
      _
    // Predicated region
    $region10: #{tpu_custom_call.1} parent=1 // pred_check
      _
    $region11: #{tpu_custom_call.1} parent=1 // pred_check_branch
      %36 = sbr.rel (0) target = $region13
    $region12: #{tpu_custom_call.1} parent=1 // pred_region
      _
    $region13: #{tpu_custom_call.1} parent=1 // pred_fallthru
      _
    // Predicated region
    $region14: #{tpu_custom_call.1} parent=1 // pred_check
      _
    $region15: #{tpu_custom_call.1} parent=1 // pred_check_branch
      %38 = sbr.rel (0) target = $region17
    $region16: #{tpu_custom_call.1} parent=1 // pred_region
      %39 = dma.done [#allocation3], 128
    $region17: #{tpu_custom_call.1} parent=1 // pred_fallthru
      _
    // Predicated region
    $region18: #{tpu_custom_call.1} parent=1 // pred_check
      _
    $region19: #{tpu_custom_call.1} parent=1 // pred_check_branch
      %41 = sbr.rel (0) target = $region21
    $region20: #{tpu_custom_call.1} parent=1 // pred_region
      %42 = dma.done [#allocation6], 256
    $region21: #{tpu_custom_call.1} parent=1 // pred_fallthru
      _
    %v44 = vld [vmem:[#allocation2] sm:$0xf]
    %v45 = vld [vmem:[#allocation2 + $0x4] sm:$0xf]
    %v46 = vld [vmem:[#allocation5] sm:$0xf]
    %v47 = vld [vmem:[#allocation5 + $0x4] sm:$0xf]
    %v48 = vld [vmem:[#allocation5 + $0x8] sm:$0xf]
    %v49 = vld [vmem:[#allocation5 + $0xc] sm:$0xf]
    %v50 = vld [vmem:[%s2] sm:$0x1]
    %v52 = vlaneseq
    %v53 = vshrl.u32 %v52, 7
    %v54 = vsub.s32 0, %v53
    %v55 = vrot.slane %v50, %v54
    %v59 = vunpack.c.l.b16 %v44
    %v60 = vunpack.c.l.b16 %v45
    %v61 = vpack.c.b16 %v60, %v59
    %v66 = vunpack.c.l.b16 %v46
    %v67 = vunpack.c.l.b16 %v47
    %v68 = vunpack.c.l.b16 %v48
    %v69 = vunpack.c.l.b16 %v49
    %v70 = vpack.c.b16 %v67, %v66
    %v71 = vpack.c.b16 %v69, %v68
    %vm74 = vcmask 261120
    %v76 = vsel %vm74, %v61, 0
    %78 = vmatprep.subr.bf16.mxu0 0
    %79 = vmatpush1.bf16.msra.mxu0 0
    %80 = vmatprep.subr.bf16.mxu0 0
    %81 = vmatpush1.bf16.msra.mxu0 0
    %82 = vmatprep.subr.bf16.mxu0 0
    %83 = vmatpush1.bf16.msra.mxu0 0
    %84 = vmatprep.subr.bf16.mxu0 0
    %85 = vmatpush1.bf16.msra.mxu0 0
    %86 = vmatprep.subr.bf16.mxu0 0
    %87 = vmatpush1.bf16.msra.mxu0 0
    %88 = vmatprep.subr.bf16.mxu0 0
    %89 = vmatpush1.bf16.msra.mxu0 0
    %90 = vmatprep.subr.bf16.mxu0 0
    %91 = vmatpush1.bf16.msra.mxu0 %v71
    %92 = vmatprep.subr.bf16.mxu0 0
    %93 = vmatpush1.bf16.msra.mxu0 %v70
    %94 = vmatprep.subr.bf16.mxu0 0
    %95 = vmatpush2.bf16.msra.mxu0 0
    %96 = vmatprep.subr.bf16.mxu0 0
    %97 = vmatpush2.bf16.msra.mxu0 0
    %98 = vmatprep.subr.bf16.mxu0 0
    %99 = vmatpush2.bf16.msra.mxu0 0
    %100 = vmatprep.subr.bf16.mxu0 0
    %101 = vmatpush2.bf16.msra.mxu0 0
    %102 = vmatprep.subr.bf16.mxu0 0
    %103 = vmatpush2.bf16.msra.mxu0 0
    %104 = vmatprep.subr.bf16.mxu0 0
    %105 = vmatpush2.bf16.msra.mxu0 0
    %106 = vmatprep.subr.bf16.mxu0 0
    %107 = vmatpush2.bf16.msra.mxu0 0
    %108 = vmatprep.subr.bf16.mxu0 0
    %109 = vmatpush2.bf16.msra.mxu0 0
    %110 = vmatprep.mubr.bf16.mxu0 0
    %111 = vmatmul.mubr.bf16.gmra.mxu0 %v76
    %v112 = vpop.f32.mrf.mxu0
    %v113 = vadd.f32 %v55, %v112
    %v114 = vpop.f32.mrf.mxu0
    %v115 = vpop.f32.mrf.mxu0
    %v116 = vadd.f32 %v55, %v115
    %v117 = vpop.f32.mrf.mxu0
    %118 = vdwg.mxu0
    %v119 = vpack.c.bf16 %v116, %v113
    %v121 = vunpack.c.l.b16 %v119
    %v122 = vunpack.c.h.b16 %v119
    %v123 = vpack.c.b16 %v121, %v121
    %v124 = vpack.c.b16 %v122, %v122
    %vm127 = vcmask 781312
    %128 = vst.msk [vmem:[#allocation7] sm:$0xf] %vm127, %v123
    %129 = vst.msk [vmem:[#allocation7 + $0x4] sm:$0xf] %vm127, %v124
    // Predicated region
    $region22: #{tpu_custom_call.1} parent=1 // pred_check
      _
    $region23: #{tpu_custom_call.1} parent=1 // pred_check_branch
      %131 = sbr.rel (0) target = $region25
    $region24: #{tpu_custom_call.1} parent=1 // pred_region
      %s133 = ssub.s32 128, 128
      %134 = vsyncadd [#allocation4], %s133
      %s135 = sshll.u32 [#allocation7], 4
      %s136 = int_to_ptr.vmem [resolvable:$true] %s135
      %141 = dma.vmem_to_hbm [thread:$0]  %s136, 128, %s3, [#allocation4], 64, 64, 4
    $region25: #{tpu_custom_call.1} parent=1 // pred_fallthru
      _
    // Predicated region
    $region26: #{tpu_custom_call.1} parent=1 // pred_check
      _
    $region27: #{tpu_custom_call.1} parent=1 // pred_check_branch
      %143 = sbr.rel (0) target = $region29
    $region28: #{tpu_custom_call.1} parent=1 // pred_region
      %144 = dma.done [#allocation4], 128
    $region29: #{tpu_custom_call.1} parent=1 // pred_fallthru
      _
    %145 = vsyncpa [#allocation3], 1
    %146 = vsyncpa [#allocation6], 1
    %147 = vsyncpa [#allocation4], 1

</llo_original>
